<compile_context>
chip_gen: v6e
topology: v6e:2x2x1
jax: 0.10.0
libtpu: 0.0.40
codegen_flags: <defaults>
</compile_context>

<pallas_src>
import functools

import jax
import jax.numpy as jnp
import numpy as np
from jax.experimental import pallas as pl
from jax.experimental.pallas import tpu as pltpu


_VMEM_BUFFER_BUDGET = 24 * 1024 * 1024  # safe on v5e/v6e/v7x scoped budgets


def _round_up(x, m):
    return ((x + m - 1) // m) * m


# ----------------------------------------------------------------------------
# Kernels
# ----------------------------------------------------------------------------
def _matmul_relu_kernel(x_ref, wt_ref, o_ref, *, precision):
    # Single D-step path: (TM, D) @ (D, K_pad) on the MXU, f32 accumulation,
    # ReLU, lane-dense store.
    y = jax.lax.dot_general(
        x_ref[...],
        wt_ref[...],
        dimension_numbers=(((1,), (0,)), ((), ())),
        preferred_element_type=jnp.float32,
        precision=precision,
    )
    o_ref[...] = jnp.maximum(y, 0.0).astype(o_ref.dtype)


def _matmul_relu_acc_kernel(x_ref, wt_ref, o_ref, acc_ref, *, precision):
    # D-tiled path (large D): accumulate partial products in an f32 VMEM
    # scratch across the "arbitrary" reduction axis; ReLU + store on the last
    # step.  Batch axis stays "parallel" (scratch is per-core).
    d = pl.program_id(1)

    @pl.when(d == 0)
    def _init():
        acc_ref[...] = jnp.zeros_like(acc_ref)

    acc_ref[...] += jax.lax.dot_general(
        x_ref[...],
        wt_ref[...],
        dimension_numbers=(((1,), (0,)), ((), ())),
        preferred_element_type=jnp.float32,
        precision=precision,
    )

    @pl.when(d == pl.num_programs(1) - 1)
    def _store():
        o_ref[...] = jnp.maximum(acc_ref[...], 0.0).astype(o_ref.dtype)


# ----------------------------------------------------------------------------
# Tiling heuristics
# ----------------------------------------------------------------------------
def _pick_block_d(D):
    """Full D when it fits comfortably; otherwise a 128-multiple divisor."""
    if D <= 4096:
        return D
    for cand in (4096, 2048, 1024, 512, 256, 128):
        if D % cand == 0:
            return cand
    return D  # odd D: keep whole (block must equal full dim if not %128)


def _pick_block_b(B, row_gran, per_row_bytes, row_budget_bytes):
    """Largest batch tile that fits the VMEM row budget, is a multiple of the
    sublane row granularity, and wastes <= B/8 rows in padding."""
    cap = max(row_gran,
              (row_budget_bytes // max(per_row_bytes, 1)) // row_gran * row_gran)
    cap = min(cap, 1024)  # diminishing returns past ~1024 rows
    if B <= cap:
        return _round_up(B, row_gran)  # single tile, minimal padding
    block = cap
    if block >= 256:
        block = (block // 256) * 256   # match 2x256x256 MXU streaming
    # shrink until batch-padding waste is <= B/8
    while block > row_gran and (_round_up(B, block) - B) * 8 > B:
        block = max(row_gran, (block // 2) // row_gran * row_gran)
    return block


# ----------------------------------------------------------------------------
# Forward
# ----------------------------------------------------------------------------
def basis_autoencoder_forward(x, basis, coefficients, *, block_b=None,
                              block_d=None, compute_dtype=jnp.bfloat16,
                              out_dtype=jnp.float32, precision=None):
    """relu(F.linear(x, basis @ coefficients)).

    x: (B, D), basis: (K, D, K), coefficients: (K,)  ->  (B, K) out_dtype.
    """
    B, D = x.shape
    K = basis.shape[0]
    assert basis.shape == (K, D, K), basis.shape
    assert coefficients.shape == (K,), coefficients.shape

    x_item = jnp.dtype(compute_dtype).itemsize
    out_item = jnp.dtype(out_dtype).itemsize
    # Sublane packing: 8 rows/f32, 16/bf16, 32/int8-fp8.
    row_gran = max(8, 32 // x_item)

    # ---- Hoisted weight build (once per call; O(K*D*K), tiny vs the matmul).
    # W = basis @ coefficients ; kernel consumes W^T of shape (D, K_pad).
    # HIGHEST precision here costs nothing and keeps the f32 path exact.
    w_t = jnp.einsum("odk,k->do",
                     basis.astype(jnp.float32),
                     coefficients.astype(jnp.float32),
                     precision=jax.lax.Precision.HIGHEST)

    # Lane-dense output: pad the output-feature axis to a multiple of 128.
    k_pad = _round_up(K, 128)
    if k_pad != K:
        w_t = jnp.pad(w_t, ((0, 0), (0, k_pad - K)))
    w_t = w_t.astype(compute_dtype)

    # ---- feature-dim (reduction) tiling --------------------------------------
    if block_d is None:
        block_d = _pick_block_d(D)
    assert block_d == D or (D % block_d == 0 and block_d % 128 == 0), block_d
    num_d_tiles = D // block_d
    multi_d = num_d_tiles > 1

    # ---- batch tiling, bounded by an explicit VMEM budget --------------------
    w_bufs = 2 if multi_d else 1           # single-buffer a never-changing block
    fixed_w_bytes = w_bufs * block_d * k_pad * x_item
    per_row_bytes = (2 * block_d * x_item          # x double-buffer
                     + 2 * k_pad * out_item        # out double-buffer
                     + (k_pad * 4 if multi_d else 0))  # f32 accumulator scratch
    row_budget = max(_VMEM_BUFFER_BUDGET - fixed_w_bytes,
                     row_gran * per_row_bytes)
    if block_b is None:
        block_b = _pick_block_b(B, row_gran, per_row_bytes, row_budget)
    assert block_b % row_gran == 0, (
        f"block_b must be a multiple of {row_gran} for {jnp.dtype(compute_dtype)}")

    b_pad = _round_up(B, block_b)
    x_p = x.astype(compute_dtype)
    if b_pad != B:
        x_p = jnp.pad(x_p, ((0, b_pad - B), (0, 0)))

    # ---- explicit VMEM budget -------------------------------------------------
    need = fixed_w_bytes + block_b * per_row_bytes
    vmem_limit = int(max(min(need + need // 2 + (2 << 20), 48 << 20), 8 << 20))

    # ---- pallas_call ----------------------------------------------------------
    grid = (b_pad // block_b, num_d_tiles)
    x_spec = pl.BlockSpec((block_b, block_d), lambda i, d: (i, d))
    out_spec = pl.BlockSpec((block_b, k_pad), lambda i, d: (i, 0))

    if multi_d:
        # W^T block changes with d -> keep default double-buffering.
        wt_spec = pl.BlockSpec((block_d, k_pad), lambda i, d: (d, 0))
        kernel = functools.partial(_matmul_relu_acc_kernel, precision=precision)
        scratch = [pltpu.VMEM((block_b, k_pad), jnp.float32)]
    else:
        # Constant block index: DMA'd once, single buffer is enough.
        wt_spec = pl.BlockSpec((block_d, k_pad), lambda i, d: (d, 0),
                               pipeline_mode=pl.Buffered(1))
        kernel = functools.partial(_matmul_relu_kernel, precision=precision)
        scratch = []

    out = pl.pallas_call(
        kernel,
        out_shape=jax.ShapeDtypeStruct((b_pad, k_pad), out_dtype),
        grid=grid,
        in_specs=[x_spec, wt_spec],
        out_specs=out_spec,
        scratch_shapes=scratch,
        compiler_params=pltpu.CompilerParams(
            dimension_semantics=("parallel", "arbitrary"),
            vmem_limit_bytes=vmem_limit,
        ),
    )(x_p, w_t)

    return out[:B, :K]


# ----------------------------------------------------------------------------
# Self-test
# ----------------------------------------------------------------------------
def _numpy_reference(x, basis, coefficients):
    basis64 = np.asarray(basis, np.float64)
    coeff64 = np.asarray(coefficients, np.float64)
    x64 = np.asarray(x, np.float64)
    w64 = np.einsum("odk,k->od", basis64, coeff64)     # basis @ coefficients
    return np.maximum(x64 @ w64.T, 0.0)                # relu(F.linear(x, w))


if __name__ == "__main__":
    key = jax.random.PRNGKey(0)

    # ---- Test 1: small shapes consistent with the module --------------------
    B, D, K = 16, 32, 8
    k_basis, k_coeff, k_x, key = jax.random.split(key, 4)
    basis = jax.random.normal(k_basis, (K, D, K), dtype=jnp.float32)
    coefficients = jax.random.normal(k_coeff, (K,), dtype=jnp.float32)
    x = jax.random.normal(k_x, (B, D), dtype=jnp.float32)
    ref = _numpy_reference(x, basis, coefficients)

    # Default path: bf16 matmul operands (native v6e/v7x MXU), f32 accumulation.
    out_bf16 = jax.block_until_ready(
        basis_autoencoder_forward(x, basis, coefficients))
    np.testing.assert_allclose(np.asarray(out_bf16), ref, rtol=5e-2, atol=5e-1)

    # Exact f32 path for a tight numerical check of the kernel itself.
    out_f32 = jax.block_until_ready(
        basis_autoencoder_forward(x, basis, coefficients,
                                  compute_dtype=jnp.float32,
                                  precision=jax.lax.Precision.HIGHEST))
    np.testing.assert_allclose(np.asarray(out_f32), ref, rtol=1e-3, atol=1e-3)

    # ---- Test 2: non-multiple batch + D-tiled accumulator path --------------
    B2, D2, K2 = 100, 512, 8
    k_basis, k_coeff, k_x, key = jax.random.split(key, 4)
    basis2 = jax.random.normal(k_basis, (K2, D2, K2), dtype=jnp.float32)
    coefficients2 = jax.random.normal(k_coeff, (K2,), dtype=jnp.float32)
    x2 = jax.random.normal(k_x, (B2, D2), dtype=jnp.float32)
    ref2 = _numpy_reference(x2, basis2, coefficients2)

    out2 = jax.block_until_ready(
        basis_autoencoder_forward(x2, basis2, coefficients2,
                                  block_d=256,   # 2 reduction steps: acc path
                                  compute_dtype=jnp.float32,
                                  precision=jax.lax.Precision.HIGHEST))
    np.testing.assert_allclose(np.asarray(out2), ref2, rtol=1e-3, atol=1e-2)

    print("KERNEL_OK")
</pallas_src>

<mosaic_0001>
module attributes {stable_mosaic.version = 11 : i64} {
  func.func @_matmul_relu_kernel(%arg0: i32, %arg1: i32, %arg2: memref<16x32xbf16, #tpu.memory_space<vmem>>, %arg3: memref<32x128xbf16, #tpu.memory_space<vmem>>, %arg4: memref<16x128xf32, #tpu.memory_space<vmem>>) attributes {dimension_semantics = [#tpu.dimension_semantics<parallel>, #tpu.dimension_semantics<arbitrary>], iteration_bounds = array<i64: 1, 1>, scalar_prefetch = 0 : i64, scratch_operands = 0 : i64, tpu.core_type = #tpu.core_type<tc>, window_params = [{transform_indices = @transform_0, window_bounds = array<i64: 16, 32>}, {pipeline_mode = #tpu.pipeline_mode<synchronous>, transform_indices = @transform_1, window_bounds = array<i64: 32, 128>}, {transform_indices = @transform_2, window_bounds = array<i64: 16, 128>}]} {
    %c0 = arith.constant 0 : index
    %c0_0 = arith.constant 0 : index
    %0 = vector.load %arg2[%c0, %c0_0] : memref<16x32xbf16, #tpu.memory_space<vmem>>, vector<16x32xbf16>
    %c0_1 = arith.constant 0 : index
    %c0_2 = arith.constant 0 : index
    %1 = vector.load %arg3[%c0_1, %c0_2] : memref<32x128xbf16, #tpu.memory_space<vmem>>, vector<32x128xbf16>
    %cst = arith.constant dense<0.000000e+00> : vector<16x128xf32>
    %2 = tpu.matmul %0, %1, %cst {dimension_numbers = #tpu.dot_dimension_numbers<[1], [0], [0], [1], [0, 0, 1, 1], [], []>} : vector<16x32xbf16>, vector<32x128xbf16>, vector<16x128xf32> -> vector<16x128xf32>
    %cst_3 = arith.constant 0.000000e+00 : f32
    %3 = vector.broadcast %cst_3 : f32 to vector<16x128xf32>
    %4 = arith.maximumf %2, %3 : vector<16x128xf32>
    %c0_4 = arith.constant 0 : index
    %c0_5 = arith.constant 0 : index
    %5 = vector.load %arg4[%c0_4, %c0_5] : memref<16x128xf32, #tpu.memory_space<vmem>>, vector<16x128xf32>
    tpu.vector_store %arg4[%c0_4, %c0_5], %4 {strides = array<i32>} : memref<16x128xf32, #tpu.memory_space<vmem>>, vector<16x128xf32>,
    return
  }
  func.func @transform_0(%arg0: i32, %arg1: i32) -> (i32, i32) {
    %c0_i32 = arith.constant 0 : i32
    return %arg0, %arg1 : i32, i32
  }
  func.func @transform_1(%arg0: i32, %arg1: i32) -> (i32, i32) {
    %c0_i32 = arith.constant 0 : i32
    %c0_i32_0 = arith.constant 0 : i32
    return %arg1, %c0_i32 : i32, i32
  }
  func.func @transform_2(%arg0: i32, %arg1: i32) -> (i32, i32) {
    %c0_i32 = arith.constant 0 : i32
    %c0_i32_0 = arith.constant 0 : i32
    return %arg0, %c0_i32 : i32, i32
  }
}

</mosaic_0001>

<llo_original>
// kernel: tpu_custom_call.1
$region0: #{tpu_custom_call.1}
  #allocation0 [shape = 'u32[]', space=smem, size = 0x4, offset = 0x4, fixed_abs, tag = 'smem constant byte address 0x4 - core index']
  #allocation1 [shape = 'u32[144,128]{1,0:T(1,128)}', space=vmem, size = 0x12000, scoped, tag = 'internal scratch']
  %s0 = inlined_call_operand.hbm [shape: bf16[16,32], index: 0, kind: input, shape index: {}]
  %s1 = inlined_call_operand.hbm [shape: bf16[32,128], index: 1, kind: input, shape index: {}]
  %s2 = inlined_call_operand.hbm [shape: f32[16,128], index: 2, kind: output, shape index: {}]
  %s3 = sld [smem:[#allocation0]]
  $region26: #{tpu_custom_call.1} parent=0
    _
  %s5 = ssub.s32 1, %s3
  %s6 = scalar_select 0, %s5, %s3
  $region1: #{tpu_custom_call.1} parent=0
    #allocation2 [shape = 'u8[4096]{0}', space=vmem, size = 0x1000, scoped, tag = 'input window, operand 0, single buffered']
    #allocation3 [shape = 's32[1]{0}', space=sflag, size = 0x4, scoped, tag = 'scoped memory for tpu_custom_call.1']
    #allocation4 [shape = 's32[1]{0}', space=sflag, size = 0x4, scoped, tag = 'scoped memory for tpu_custom_call.1']
    #allocation5 [shape = 'u8[8192]{0}', space=vmem, size = 0x2000, scoped, tag = 'input window, operand 1, single buffered']
    #allocation6 [shape = 's32[1]{0}', space=sflag, size = 0x4, scoped, tag = 'scoped memory for tpu_custom_call.1']
    #allocation7 [shape = 'u8[8192]{0}', space=vmem, size = 0x2000, scoped, tag = 'output window, operand 0, single buffered']
    %7 = vsyncpa [#allocation3], 0
    %8 = vsyncpa [#allocation6], 0
    %9 = vsyncpa [#allocation4], 0
    // Predicated region
    $region2: #{tpu_custom_call.1} parent=1 // pred_check
      _
    $region3: #{tpu_custom_call.1} parent=1 // pred_check_branch
      %11 = sbr.rel (0) target = $region5
    $region4: #{tpu_custom_call.1} parent=1 // pred_region
      %s13 = ssub.s32 128, 128
      %14 = vsyncadd [#allocation3], %s13
      %s15 = sshll.u32 [#allocation2], 4
      %s16 = int_to_ptr.vmem [resolvable:$true] %s15
      %21 = dma.hbm_to_vmem [thread:$0]  %s0, 128, %s16, [#allocation3], 64, 64, 4
    $region5: #{tpu_custom_call.1} parent=1 // pred_fallthru
      _
    // Predicated region
    $region6: #{tpu_custom_call.1} parent=1 // pred_check
      _
    $region7: #{tpu_custom_call.1} parent=1 // pred_check_branch
      %23 = sbr.rel (0) target = $region9
    $region8: #{tpu_custom_call.1} parent=1 // pred_region
      %s25 = ssub.s32 256, 256
      %26 = vsyncadd [#allocation6], %s25
      %s27 = sshll.u32 [#allocation5], 4
      %s28 = int_to_ptr.vmem [resolvable:$true] %s27
      %33 = dma.hbm_to_vmem [thread:$0]  %s1, 256, %s28, [#allocation6], 64, 64, 4
    $region9: #{tpu_custom_call.1} parent=1 // pred_fallthru
      _
    // Predicated region
    $region10: #{tpu_custom_call.1} parent=1 // pred_check
      _
    $region11: #{tpu_custom_call.1} parent=1 // pred_check_branch
      %35 = sbr.rel (0) target = $region13
    $region12: #{tpu_custom_call.1} parent=1 // pred_region
      %36 = dma.done [#allocation3], 128
    $region13: #{tpu_custom_call.1} parent=1 // pred_fallthru
      _
    // Predicated region
    $region14: #{tpu_custom_call.1} parent=1 // pred_check
      _
    $region15: #{tpu_custom_call.1} parent=1 // pred_check_branch
      %38 = sbr.rel (0) target = $region17
    $region16: #{tpu_custom_call.1} parent=1 // pred_region
      %39 = dma.done [#allocation6], 256
    $region17: #{tpu_custom_call.1} parent=1 // pred_fallthru
      _
    %v41 = vld [vmem:[#allocation2] sm:$0xf]
    %v42 = vld [vmem:[#allocation2 + $0x4] sm:$0xf]
    %v43 = vld [vmem:[#allocation5] sm:$0xf]
    %v44 = vld [vmem:[#allocation5 + $0x4] sm:$0xf]
    %v45 = vld [vmem:[#allocation5 + $0x8] sm:$0xf]
    %v46 = vld [vmem:[#allocation5 + $0xc] sm:$0xf]
    %v49 = vunpack.c.l.b16 %v41
    %v50 = vunpack.c.l.b16 %v42
    %v51 = vpack.c.b16 %v50, %v49
    %v56 = vunpack.c.l.b16 %v43
    %v57 = vunpack.c.l.b16 %v44
    %v58 = vunpack.c.l.b16 %v45
    %v59 = vunpack.c.l.b16 %v46
    %v60 = vpack.c.b16 %v57, %v56
    %v61 = vpack.c.b16 %v59, %v58
    %vm64 = vcmask 261120
    %v66 = vsel %vm64, %v51, 0
    %68 = vmatprep.subr.bf16.mxu0 0
    %69 = vmatpush1.bf16.msra.mxu0 0
    %70 = vmatprep.subr.bf16.mxu0 0
    %71 = vmatpush1.bf16.msra.mxu0 0
    %72 = vmatprep.subr.bf16.mxu0 0
    %73 = vmatpush1.bf16.msra.mxu0 0
    %74 = vmatprep.subr.bf16.mxu0 0
    %75 = vmatpush1.bf16.msra.mxu0 0
    %76 = vmatprep.subr.bf16.mxu0 0
    %77 = vmatpush1.bf16.msra.mxu0 0
    %78 = vmatprep.subr.bf16.mxu0 0
    %79 = vmatpush1.bf16.msra.mxu0 0
    %80 = vmatprep.subr.bf16.mxu0 0
    %81 = vmatpush1.bf16.msra.mxu0 %v61
    %82 = vmatprep.subr.bf16.mxu0 0
    %83 = vmatpush1.bf16.msra.mxu0 %v60
    %84 = vmatprep.subr.bf16.mxu0 0
    %85 = vmatpush2.bf16.msra.mxu0 0
    %86 = vmatprep.subr.bf16.mxu0 0
    %87 = vmatpush2.bf16.msra.mxu0 0
    %88 = vmatprep.subr.bf16.mxu0 0
    %89 = vmatpush2.bf16.msra.mxu0 0
    %90 = vmatprep.subr.bf16.mxu0 0
    %91 = vmatpush2.bf16.msra.mxu0 0
    %92 = vmatprep.subr.bf16.mxu0 0
    %93 = vmatpush2.bf16.msra.mxu0 0
    %94 = vmatprep.subr.bf16.mxu0 0
    %95 = vmatpush2.bf16.msra.mxu0 0
    %96 = vmatprep.subr.bf16.mxu0 0
    %97 = vmatpush2.bf16.msra.mxu0 0
    %98 = vmatprep.subr.bf16.mxu0 0
    %99 = vmatpush2.bf16.msra.mxu0 0
    %100 = vmatprep.mubr.bf16.mxu0 0
    %101 = vmatmul.mubr.bf16.gmra.mxu0 %v66
    %v102 = vpop.f32.mrf.mxu0
    %v103 = vadd.f32 0.0, %v102
    %v104 = vpop.f32.mrf.mxu0
    %v105 = vpop.f32.mrf.mxu0
    %v106 = vadd.f32 0.0, %v105
    %v107 = vpop.f32.mrf.mxu0
    %108 = vdwg.mxu0
    %v109 = vmax.f32 %v103, 0.0
    %v110 = vmax.f32 %v106, 0.0
    %111 = vst [vmem:[#allocation7] sm:$0xff] %v109
    %112 = vst [vmem:[#allocation7 + $0x8] sm:$0xff] %v110
    // Predicated region
    $region18: #{tpu_custom_call.1} parent=1 // pred_check
      _
    $region19: #{tpu_custom_call.1} parent=1 // pred_check_branch
      %114 = sbr.rel (0) target = $region21
    $region20: #{tpu_custom_call.1} parent=1 // pred_region
      %s116 = ssub.s32 256, 256
      %117 = vsyncadd [#allocation4], %s116
      %s118 = sshll.u32 [#allocation7], 4
      %s119 = int_to_ptr.vmem [resolvable:$true] %s118
      %124 = dma.vmem_to_hbm [thread:$0]  %s119, 256, %s2, [#allocation4], 128, 128, 8
    $region21: #{tpu_custom_call.1} parent=1 // pred_fallthru
      _
    // Predicated region
    $region22: #{tpu_custom_call.1} parent=1 // pred_check
      _
    $region23: #{tpu_custom_call.1} parent=1 // pred_check_branch
      %126 = sbr.rel (0) target = $region25
    $region24: #{tpu_custom_call.1} parent=1 // pred_region
      %127 = dma.done [#allocation4], 256
    $region25: #{tpu_custom_call.1} parent=1 // pred_fallthru
      _
    %128 = vsyncpa [#allocation3], 1
    %129 = vsyncpa [#allocation6], 1
    %130 = vsyncpa [#allocation4], 1

</llo_original>
